<compile_context>
chip_gen: v5e
topology: v5e:2x2
jax: 0.10.0
libtpu: 0.0.40
codegen_flags: <defaults>
</compile_context>

<pallas_src>
import functools

import jax
import jax.numpy as jnp
from jax.experimental import pallas as pl
from jax.experimental.pallas import tpu as pltpu

IN_F, HID_F, OUT_F = 100, 200, 10      # logical (PyTorch) sizes
HID_P, OUT_P = 256, 128                # lane/MXU-padded sizes (hidden + padded logits)


def tiny_model_kernel(x_ref, w1_ref, b1_ref, w2_ref, b2_ref, o_ref):
    # x_ref: (tb, IN_F) f32; w1: (IN_F, HID_P) bf16; b1: (1, HID_P) f32;
    # w2: (HID_P, OUT_P) bf16; b2: (1, OUT_P) f32 (-1e30 on padded lanes);
    # o_ref: (tb, OUT_F) f32.
    x = x_ref[...].astype(jnp.bfloat16)
    h = jnp.dot(x, w1_ref[...], preferred_element_type=jnp.float32)       # (tb, HID_P)
    h = jnp.maximum(h + b1_ref[...], 0.0)                                 # bias + ReLU (f32)
    logits = jnp.dot(h.astype(jnp.bfloat16), w2_ref[...],
                     preferred_element_type=jnp.float32)                  # (tb, OUT_P)
    logits = logits + b2_ref[...]            # padded lanes carry -1e30 -> exp() == 0
    m = jnp.max(logits, axis=-1, keepdims=True)
    e = jnp.exp(logits - m)
    denom = jnp.sum(e, axis=-1, keepdims=True)
    probs = e / denom                        # exact divide: rows sum to 1 (mem-bound, free)
    o_ref[...] = probs[:, :OUT_F]            # narrow store: only real lanes hit HBM


def prepare_params(w1, b1, w2, b2):
    """One-time padding/casting of the weights (hoisted out of the forward path)."""
    w1p = jnp.zeros((IN_F, HID_P), jnp.bfloat16).at[:, :HID_F].set(
        w1.astype(jnp.bfloat16))
    b1p = jnp.zeros((1, HID_P), jnp.float32).at[:, :HID_F].set(
        b1.reshape(1, HID_F).astype(jnp.float32))
    w2p = jnp.zeros((HID_P, OUT_P), jnp.bfloat16).at[:HID_F, :OUT_F].set(
        w2.astype(jnp.bfloat16))
    b2p = jnp.full((1, OUT_P), -1e30, jnp.float32).at[:, :OUT_F].set(
        b2.reshape(1, OUT_F).astype(jnp.float32))
    return w1p, b1p, w2p, b2p


def _round_up(n, m):
    return ((n + m - 1) // m) * m


def _choose_tile(B, tile_b):
    # Multiple of 16; keep >=2 tiles when the batch allows it so v7x's two
    # TensorCores both get work on the "parallel" grid axis.
    if B <= 16:
        return 16
    half = _round_up((B + 1) // 2, 16)
    return max(16, min(tile_b, half))


@functools.partial(jax.jit, static_argnames=("tile_b",))
def tiny_model_forward(x, w1p, b1p, w2p, b2p, *, tile_b=2048):
    B = x.shape[0]
    tb = _choose_tile(B, tile_b)
    n_tiles = pl.cdiv(B, tb)

    weight_bytes = (IN_F * HID_P + HID_P * OUT_P) * 2 + (HID_P + OUT_P) * 4
    cost = pl.CostEstimate(
        flops=2 * B * (IN_F * HID_P + HID_P * OUT_P),
        transcendentals=B * OUT_P,
        bytes_accessed=B * IN_F * 4 + B * OUT_F * 4 + weight_bytes,
    )

    out = pl.pallas_call(
        tiny_model_kernel,
        out_shape=jax.ShapeDtypeStruct((B, OUT_F), jnp.float32),
        grid=(n_tiles,),
        in_specs=[
            pl.BlockSpec((tb, IN_F), lambda i: (i, 0)),      # x: blocked on batch (full K)
            pl.BlockSpec((IN_F, HID_P), lambda i: (0, 0)),   # w1: VMEM-resident
            pl.BlockSpec((1, HID_P), lambda i: (0, 0)),      # b1: resident
            pl.BlockSpec((HID_P, OUT_P), lambda i: (0, 0)),  # w2: resident
            pl.BlockSpec((1, OUT_P), lambda i: (0, 0)),      # b2: resident
        ],
        out_specs=pl.BlockSpec((tb, OUT_F), lambda i: (i, 0)),  # narrow writeback
        compiler_params=pltpu.CompilerParams(
            dimension_semantics=("parallel",),               # v7x: shard tiles over 2 TCs
            vmem_limit_bytes=32 * 1024 * 1024,               # v7x-safe headroom
        ),
        cost_estimate=cost,
    )(x, w1p, b1p, w2p, b2p)
    return out


def init_params(key):
    # PyTorch default Linear init: U(-1/sqrt(fan_in), 1/sqrt(fan_in)); stored as [in, out].
    k1, k2, k3, k4 = jax.random.split(key, 4)
    bound1 = 1.0 / jnp.sqrt(jnp.float32(IN_F))
    bound2 = 1.0 / jnp.sqrt(jnp.float32(HID_F))
    w1 = jax.random.uniform(k1, (IN_F, HID_F), jnp.float32, -bound1, bound1)
    b1 = jax.random.uniform(k2, (HID_F,), jnp.float32, -bound1, bound1)
    w2 = jax.random.uniform(k3, (HID_F, OUT_F), jnp.float32, -bound2, bound2)
    b2 = jax.random.uniform(k4, (OUT_F,), jnp.float32, -bound2, bound2)
    return w1, b1, w2, b2


def reference_forward_f32(x, w1, b1, w2, b2):
    h = jnp.maximum(x @ w1 + b1, 0.0)
    return jax.nn.softmax(h @ w2 + b2, axis=-1)


def reference_forward_bf16(x, w1, b1, w2, b2):
    # Matches the kernel numerics: bf16 matmul inputs, f32 accumulate/elementwise.
    h = jnp.dot(x.astype(jnp.bfloat16), w1.astype(jnp.bfloat16),
                preferred_element_type=jnp.float32)
    h = jnp.maximum(h + b1, 0.0)
    logits = jnp.dot(h.astype(jnp.bfloat16), w2.astype(jnp.bfloat16),
                     preferred_element_type=jnp.float32) + b2
    return jax.nn.softmax(logits, axis=-1)


if __name__ == "__main__":
    key = jax.random.PRNGKey(0)
    kx, kp = jax.random.split(key)
    w1, b1, w2, b2 = init_params(kp)
    params = prepare_params(w1, b1, w2, b2)

    # Small single-tile check.
    B = 8
    x = jax.random.normal(kx, (B, IN_F), jnp.float32)
    out = jax.block_until_ready(tiny_model_forward(x, *params))
    assert out.shape == (B, OUT_F)

    # Kernel-numerics check (same bf16-matmul / f32-accumulate recipe).
    ref_bf16 = reference_forward_bf16(x, w1, b1, w2, b2)
    assert jnp.allclose(out, ref_bf16, atol=3e-3, rtol=3e-3)

    # Semantic check vs. the f32 PyTorch-equivalent forward (bf16 precision slack).
    ref_f32 = reference_forward_f32(x, w1, b1, w2, b2)
    assert jnp.allclose(out, ref_f32, atol=2e-2, rtol=2e-2)

    # Softmax rows sum to 1 (exact division now, only f32 rounding).
    assert jnp.allclose(jnp.sum(out, axis=-1), jnp.ones((B,)), atol=1e-4)

    # Multi-tile + partial-last-tile check (B=40 with a forced 16-row tile).
    B2 = 40
    x2 = jax.random.normal(jax.random.PRNGKey(1), (B2, IN_F), jnp.float32)
    out2 = jax.block_until_ready(tiny_model_forward(x2, *params, tile_b=16))
    assert out2.shape == (B2, OUT_F)
    assert jnp.allclose(out2, reference_forward_f32(x2, w1, b1, w2, b2),
                        atol=2e-2, rtol=2e-2)
    assert jnp.allclose(jnp.sum(out2, axis=-1), jnp.ones((B2,)), atol=1e-4)

    print("KERNEL_OK")
</pallas_src>

<mosaic_0001>
module attributes {stable_mosaic.version = 11 : i64} {
  func.func @tiny_model_kernel(%arg0: i32, %arg1: memref<16x100xf32, #tpu.memory_space<vmem>>, %arg2: memref<100x256xbf16, #tpu.memory_space<vmem>>, %arg3: memref<1x256xf32, #tpu.memory_space<vmem>>, %arg4: memref<256x128xbf16, #tpu.memory_space<vmem>>, %arg5: memref<1x128xf32, #tpu.memory_space<vmem>>, %arg6: memref<16x10xf32, #tpu.memory_space<vmem>>) attributes {dimension_semantics = [#tpu.dimension_semantics<parallel>], iteration_bounds = array<i64: 1>, scalar_prefetch = 0 : i64, scratch_operands = 0 : i64, tpu.core_type = #tpu.core_type<tc>, window_params = [{transform_indices = @transform_0, window_bounds = array<i64: 16, 100>}, {pipeline_mode = #tpu.pipeline_mode<synchronous>, transform_indices = @transform_1, window_bounds = array<i64: 100, 256>}, {pipeline_mode = #tpu.pipeline_mode<synchronous>, transform_indices = @transform_2, window_bounds = array<i64: 1, 256>}, {pipeline_mode = #tpu.pipeline_mode<synchronous>, transform_indices = @transform_3, window_bounds = array<i64: 256, 128>}, {pipeline_mode = #tpu.pipeline_mode<synchronous>, transform_indices = @transform_4, window_bounds = array<i64: 1, 128>}, {transform_indices = @transform_5, window_bounds = array<i64: 16, 10>}]} {
    %c0 = arith.constant 0 : index
    %c0_0 = arith.constant 0 : index
    %0 = vector.load %arg1[%c0, %c0_0] : memref<16x100xf32, #tpu.memory_space<vmem>>, vector<16x100xf32>
    %1 = arith.truncf %0 : vector<16x100xf32> to vector<16x100xbf16>
    %c0_1 = arith.constant 0 : index
    %c0_2 = arith.constant 0 : index
    %2 = vector.load %arg2[%c0_1, %c0_2] : memref<100x256xbf16, #tpu.memory_space<vmem>>, vector<100x256xbf16>
    %cst = arith.constant dense<0.000000e+00> : vector<16x256xf32>
    %3 = tpu.matmul %1, %2, %cst {dimension_numbers = #tpu.dot_dimension_numbers<[1], [0], [0], [1], [0, 0, 1, 1], [], []>} : vector<16x100xbf16>, vector<100x256xbf16>, vector<16x256xf32> -> vector<16x256xf32>
    %c0_3 = arith.constant 0 : index
    %c0_4 = arith.constant 0 : index
    %4 = vector.load %arg3[%c0_3, %c0_4] : memref<1x256xf32, #tpu.memory_space<vmem>>, vector<1x256xf32>
    %5 = vector.broadcast %4 : vector<1x256xf32> to vector<16x256xf32>
    %6 = arith.addf %3, %5 : vector<16x256xf32>
    %cst_5 = arith.constant 0.000000e+00 : f32
    %7 = vector.broadcast %cst_5 : f32 to vector<16x256xf32>
    %8 = arith.maximumf %6, %7 : vector<16x256xf32>
    %9 = arith.truncf %8 : vector<16x256xf32> to vector<16x256xbf16>
    %c0_6 = arith.constant 0 : index
    %c0_7 = arith.constant 0 : index
    %10 = vector.load %arg4[%c0_6, %c0_7] : memref<256x128xbf16, #tpu.memory_space<vmem>>, vector<256x128xbf16>
    %cst_8 = arith.constant dense<0.000000e+00> : vector<16x128xf32>
    %11 = tpu.matmul %9, %10, %cst_8 {dimension_numbers = #tpu.dot_dimension_numbers<[1], [0], [0], [1], [0, 0, 1, 1], [], []>} : vector<16x256xbf16>, vector<256x128xbf16>, vector<16x128xf32> -> vector<16x128xf32>
    %c0_9 = arith.constant 0 : index
    %c0_10 = arith.constant 0 : index
    %12 = vector.load %arg5[%c0_9, %c0_10] : memref<1x128xf32, #tpu.memory_space<vmem>>, vector<1x128xf32>
    %13 = vector.broadcast %12 : vector<1x128xf32> to vector<16x128xf32>
    %14 = arith.addf %11, %13 : vector<16x128xf32>
    %cst_11 = arith.constant dense<0xFF800000> : vector<16xf32>
    %15 = vector.multi_reduction <maximumf>, %14, %cst_11 [1] : vector<16x128xf32> to vector<16xf32>
    %16 = vector.shape_cast %15 : vector<16xf32> to vector<16x1xf32>
    %17 = vector.broadcast %16 : vector<16x1xf32> to vector<16x128xf32>
    %18 = arith.subf %14, %17 : vector<16x128xf32>
    %19 = math.exp %18 : vector<16x128xf32>
    %cst_12 = arith.constant dense<0.000000e+00> : vector<16xf32>
    %20 = vector.multi_reduction <add>, %19, %cst_12 [1] : vector<16x128xf32> to vector<16xf32>
    %21 = vector.shape_cast %20 : vector<16xf32> to vector<16x1xf32>
    %22 = vector.broadcast %21 : vector<16x1xf32> to vector<16x128xf32>
    %23 = arith.divf %19, %22 : vector<16x128xf32>
    %24 = vector.extract_strided_slice %23 {offsets = [0, 0], sizes = [16, 10], strides = [1, 1]} : vector<16x128xf32> to vector<16x10xf32>
    %c0_13 = arith.constant 0 : index
    %c0_14 = arith.constant 0 : index
    %25 = vector.load %arg6[%c0_13, %c0_14] : memref<16x10xf32, #tpu.memory_space<vmem>>, vector<16x10xf32>
    tpu.vector_store %arg6[%c0_13, %c0_14], %24 {strides = array<i32>} : memref<16x10xf32, #tpu.memory_space<vmem>>, vector<16x10xf32>,
    return
  }
  func.func @transform_0(%arg0: i32) -> (i32, i32) {
    %c0_i32 = arith.constant 0 : i32
    %c0_i32_0 = arith.constant 0 : i32
    return %arg0, %c0_i32 : i32, i32
  }
  func.func @transform_1(%arg0: i32) -> (i32, i32) {
    %c0_i32 = arith.constant 0 : i32
    %c0_i32_0 = arith.constant 0 : i32
    %c0_i32_1 = arith.constant 0 : i32
    return %c0_i32, %c0_i32_0 : i32, i32
  }
  func.func @transform_2(%arg0: i32) -> (i32, i32) {
    %c0_i32 = arith.constant 0 : i32
    %c0_i32_0 = arith.constant 0 : i32
    %c0_i32_1 = arith.constant 0 : i32
    return %c0_i32, %c0_i32_0 : i32, i32
  }
  func.func @transform_3(%arg0: i32) -> (i32, i32) {
    %c0_i32 = arith.constant 0 : i32
    %c0_i32_0 = arith.constant 0 : i32
    %c0_i32_1 = arith.constant 0 : i32
    return %c0_i32, %c0_i32_0 : i32, i32
  }
  func.func @transform_4(%arg0: i32) -> (i32, i32) {
    %c0_i32 = arith.constant 0 : i32
    %c0_i32_0 = arith.constant 0 : i32
    %c0_i32_1 = arith.constant 0 : i32
    return %c0_i32, %c0_i32_0 : i32, i32
  }
  func.func @transform_5(%arg0: i32) -> (i32, i32) {
    %c0_i32 = arith.constant 0 : i32
    %c0_i32_0 = arith.constant 0 : i32
    return %arg0, %c0_i32 : i32, i32
  }
}

</mosaic_0001>

<llo_original>
// kernel: tiny_model_forward.1
$region0: #{tiny_model_forward.1}
  #allocation0 [shape = 'u32[]', space=smem, size = 0x4, offset = 0x4, fixed_abs, tag = 'smem constant byte address 0x4 - core index']
  #allocation1 [shape = 'u32[72,128]{1,0:T(1,128)}', space=vmem, size = 0x9000, scoped, tag = 'internal scratch']
  %s0 = inlined_call_operand.hbm [shape: f32[8,100], index: 0, kind: input, shape index: {}]
  %s1 = inlined_call_operand.hbm [shape: bf16[100,256], index: 1, kind: input, shape index: {}]
  %s2 = inlined_call_operand.hbm [shape: f32[1,256], index: 2, kind: input, shape index: {}]
  %s3 = inlined_call_operand.hbm [shape: bf16[256,128], index: 3, kind: input, shape index: {}]
  %s4 = inlined_call_operand.vmem [shape: f32[1,128], index: 4, kind: input, shape index: {}]
  %s5 = inlined_call_operand.hbm [shape: f32[8,10], index: 5, kind: output, shape index: {}]
  %s6 = sld [smem:[#allocation0]]
  $region46: #{tiny_model_forward.1} parent=0
    _
  %s8 = ssub.s32 1, %s6
  %s9 = scalar_select 0, %s8, %s6
  $region1: #{tiny_model_forward.1} parent=0
    #allocation2 [shape = 'u8[8192]{0}', space=vmem, size = 0x2000, scoped, tag = 'input window, operand 0, single buffered']
    #allocation3 [shape = 's32[1]{0}', space=sflag, size = 0x4, scoped, tag = 'scoped memory for tiny_model_forward.1']
    #allocation4 [shape = 's32[1]{0}', space=sflag, size = 0x4, scoped, tag = 'scoped memory for tiny_model_forward.1']
    #allocation5 [shape = 'u8[53248]{0}', space=vmem, size = 0xd000, scoped, tag = 'input window, operand 1, single buffered']
    #allocation6 [shape = 's32[1]{0}', space=sflag, size = 0x4, scoped, tag = 'scoped memory for tiny_model_forward.1']
    #allocation7 [shape = 'u8[1024]{0}', space=vmem, size = 0x400, scoped, tag = 'input window, operand 2, single buffered']
    #allocation8 [shape = 'u8[65536]{0}', space=vmem, size = 0x10000, scoped, tag = 'input window, operand 3, single buffered']
    #allocation9 [shape = 's32[1]{0}', space=sflag, size = 0x4, scoped, tag = 'scoped memory for tiny_model_forward.1']
    #allocation10 [shape = 'u8[8192]{0}', space=vmem, size = 0x2000, scoped, tag = 'output window, operand 0, single buffered']
    %10 = vsyncpa [#allocation3], 0
    %11 = vsyncpa [#allocation6], 0
    %12 = vsyncpa [#allocation9], 0
    %13 = vsyncpa [#allocation4], 0
    // Predicated region
    $region2: #{tiny_model_forward.1} parent=1 // pred_check
      _
    $region3: #{tiny_model_forward.1} parent=1 // pred_check_branch
      %15 = sbr.rel (0) target = $region5
    $region4: #{tiny_model_forward.1} parent=1 // pred_region
      %17 = vsyncadd [#allocation3], 128
      %s18 = sshll.u32 %s0, 4
      %s19 = int_to_ptr.hbm [resolvable:$true] %s18
      %s20 = sshll.u32 [#allocation2], 4
      %s21 = int_to_ptr.vmem [resolvable:$true] %s20
      %26 = dma.hbm_to_vmem [thread:$0]  %s19, 128, %s21, [#allocation3], 128, 128, 8
    $region5: #{tiny_model_forward.1} parent=1 // pred_fallthru
      _
    // Predicated region
    $region6: #{tiny_model_forward.1} parent=1 // pred_check
      _
    $region7: #{tiny_model_forward.1} parent=1 // pred_check_branch
      %28 = sbr.rel (0) target = $region9
    $region8: #{tiny_model_forward.1} parent=1 // pred_region
      %30 = vsyncadd [#allocation6], 0
      %s31 = sshll.u32 %s1, 4
      %s32 = int_to_ptr.hbm [resolvable:$true] %s31
      %s33 = sshll.u32 [#allocation5], 4
      %s34 = int_to_ptr.vmem [resolvable:$true] %s33
      %39 = dma.hbm_to_vmem [thread:$0]  %s32, 1664, %s34, [#allocation6], 128, 128, 8
    $region9: #{tiny_model_forward.1} parent=1 // pred_fallthru
      _
    // Predicated region
    $region10: #{tiny_model_forward.1} parent=1 // pred_check
      _
    $region11: #{tiny_model_forward.1} parent=1 // pred_check_branch
      %41 = sbr.rel (0) target = $region13
    $region12: #{tiny_model_forward.1} parent=1 // pred_region
      %43 = vsyncadd [#allocation6], 0
      %s45 = sshll.u32 %s2, 4
      %s46 = int_to_ptr.hbm [resolvable:$true] %s45
      %s47 = sshll.u32 [#allocation7], 4
      %s48 = int_to_ptr.vmem [resolvable:$true] %s47
      %50 = dma.hbm_to_vmem [thread:$0]  %s46, 32, %s48, [#allocation6]
    $region13: #{tiny_model_forward.1} parent=1 // pred_fallthru
      _
    // Predicated region
    $region14: #{tiny_model_forward.1} parent=1 // pred_check
      _
    $region15: #{tiny_model_forward.1} parent=1 // pred_check_branch
      %52 = sbr.rel (0) target = $region17
    $region16: #{tiny_model_forward.1} parent=1 // pred_region
      %54 = vsyncadd [#allocation9], 0
      %s55 = sshll.u32 %s3, 4
      %s56 = int_to_ptr.hbm [resolvable:$true] %s55
      %s57 = sshll.u32 [#allocation8], 4
      %s58 = int_to_ptr.vmem [resolvable:$true] %s57
      %63 = dma.hbm_to_vmem [thread:$0]  %s56, 2048, %s58, [#allocation9], 64, 64, 4
    $region17: #{tiny_model_forward.1} parent=1 // pred_fallthru
      _
    // Predicated region
    $region18: #{tiny_model_forward.1} parent=1 // pred_check
      _
    $region19: #{tiny_model_forward.1} parent=1 // pred_check_branch
      %65 = sbr.rel (0) target = $region21
    $region20: #{tiny_model_forward.1} parent=1 // pred_region
      _
    $region21: #{tiny_model_forward.1} parent=1 // pred_fallthru
      _
    // Predicated region
    $region22: #{tiny_model_forward.1} parent=1 // pred_check
      _
    $region23: #{tiny_model_forward.1} parent=1 // pred_check_branch
      %67 = sbr.rel (0) target = $region25
    $region24: #{tiny_model_forward.1} parent=1 // pred_region
      %69 = dma.done [#allocation3], 256
    $region25: #{tiny_model_forward.1} parent=1 // pred_fallthru
      _
    // Predicated region
    $region26: #{tiny_model_forward.1} parent=1 // pred_check
      _
    $region27: #{tiny_model_forward.1} parent=1 // pred_check_branch
      %71 = sbr.rel (0) target = $region29
    $region28: #{tiny_model_forward.1} parent=1 // pred_region
      %73 = dma.done [#allocation6], 1664
    $region29: #{tiny_model_forward.1} parent=1 // pred_fallthru
      _
    // Predicated region
    $region30: #{tiny_model_forward.1} parent=1 // pred_check
      _
    $region31: #{tiny_model_forward.1} parent=1 // pred_check_branch
      %75 = sbr.rel (0) target = $region33
    $region32: #{tiny_model_forward.1} parent=1 // pred_region
      %77 = dma.done [#allocation6], 32
    $region33: #{tiny_model_forward.1} parent=1 // pred_fallthru
      _
    // Predicated region
    $region34: #{tiny_model_forward.1} parent=1 // pred_check
      _
    $region35: #{tiny_model_forward.1} parent=1 // pred_check_branch
      %79 = sbr.rel (0) target = $region37
    $region36: #{tiny_model_forward.1} parent=1 // pred_region
      %81 = dma.done [#allocation9], 2048
    $region37: #{tiny_model_forward.1} parent=1 // pred_fallthru
      _
    %v83 = vld [vmem:[#allocation2] sm:$0xff]
    %v84 = vld [vmem:[#allocation2 + $0x8] sm:$0xff]
    %v85 = vpack.c.bf16 %v84, %v83
    %v86 = vld [vmem:[#allocation5] sm:$0xff]
    %v87 = vld [vmem:[#allocation5 + $0x8] sm:$0xff]
    %v88 = vld [vmem:[#allocation5 + $0x10] sm:$0xff]
    %v89 = vld [vmem:[#allocation5 + $0x18] sm:$0xff]
    %v90 = vld [vmem:[#allocation5 + $0x20] sm:$0xff]
    %v91 = vld [vmem:[#allocation5 + $0x28] sm:$0xff]
    %v92 = vld [vmem:[#allocation5 + $0x30] sm:$0xff]
    %v93 = vld [vmem:[#allocation5 + $0x38] sm:$0xff]
    %v94 = vld [vmem:[#allocation5 + $0x40] sm:$0xff]
    %v95 = vld [vmem:[#allocation5 + $0x48] sm:$0xff]
    %v96 = vld [vmem:[#allocation5 + $0x50] sm:$0xff]
    %v97 = vld [vmem:[#allocation5 + $0x58] sm:$0xff]
    %v98 = vld [vmem:[#allocation5 + $0x60] sm:$0x33]
    %v99 = vld [vmem:[#allocation7] sm:$0x3]
    %v101 = vperm.slane %v99, 0
    %v102 = vperm.slane %v99, 1
    %v118 = vunpack.c.l.b16 %v86
    %v119 = vunpack.c.h.b16 %v86
    %v120 = vunpack.c.l.b16 %v87
    %v121 = vunpack.c.h.b16 %v87
    %v122 = vunpack.c.l.b16 %v88
    %v123 = vunpack.c.h.b16 %v88
    %v124 = vunpack.c.l.b16 %v89
    %v125 = vunpack.c.h.b16 %v89
    %v126 = vunpack.c.l.b16 %v90
    %v127 = vunpack.c.h.b16 %v90
    %v128 = vunpack.c.l.b16 %v91
    %v129 = vunpack.c.h.b16 %v91
    %v130 = vunpack.c.l.b16 %v92
    %v131 = vunpack.c.h.b16 %v92
    %v132 = vunpack.c.l.b16 %v93
    %v133 = vunpack.c.h.b16 %v93
    %v134 = vunpack.c.l.b16 %v94
    %v135 = vunpack.c.h.b16 %v94
    %v136 = vunpack.c.l.b16 %v95
    %v137 = vunpack.c.h.b16 %v95
    %v138 = vunpack.c.l.b16 %v96
    %v139 = vunpack.c.h.b16 %v96
    %v140 = vunpack.c.l.b16 %v97
    %v141 = vunpack.c.h.b16 %v97
    %v142 = vunpack.c.l.b16 %v98
    %v143 = vunpack.c.h.b16 %v98
    %v144 = vpack.c.b16 %v120, %v118
    %v145 = vpack.c.b16 %v121, %v119
    %v146 = vpack.c.b16 %v124, %v122
    %v147 = vpack.c.b16 %v125, %v123
    %v148 = vpack.c.b16 %v128, %v126
    %v149 = vpack.c.b16 %v129, %v127
    %v150 = vpack.c.b16 %v132, %v130
    %v151 = vpack.c.b16 %v133, %v131
    %v152 = vpack.c.b16 %v136, %v134
    %v153 = vpack.c.b16 %v137, %v135
    %v154 = vpack.c.b16 %v140, %v138
    %v155 = vpack.c.b16 %v141, %v139
    %v156 = vpack.c.b16 %v142, %v142
    %v157 = vpack.c.b16 %v143, %v143
    %vm170 = vcmask 818176
    %v172 = vsel %vm170, %v85, 0
    %vm174 = vcmask 1041408
    %v176 = vsel %vm174, %v156, 0
    %v179 = vsel %vm174, %v157, 0
    %181 = vmatpush.bf16.msra.mxu0 0
    %182 = vmatpush.bf16.msra.mxu0 %v176
    %183 = vmatpush.bf16.msra.mxu0 %v154
    %184 = vmatpush.bf16.msra.mxu0 %v152
    %185 = vmatpush.bf16.msra.mxu0 %v150
    %186 = vmatpush.bf16.msra.mxu0 %v148
    %187 = vmatpush.bf16.msra.mxu0 %v146
    %188 = vmatpush.bf16.msra.mxu0 %v144
    %189 = vmatmul.bf16.gmra.mxu0 %v172
    %v190 = vpop.f32.mrf.mxu0
    %v191 = vadd.f32 %v101, %v190
    %v192 = vpop.f32.mrf.mxu0
    %v193 = vadd.f32 %v101, %v192
    %194 = vdwg.mxu0
    %195 = vmatpush.bf16.msra.mxu0 0
    %196 = vmatpush.bf16.msra.mxu0 %v179
    %197 = vmatpush.bf16.msra.mxu0 %v155
    %198 = vmatpush.bf16.msra.mxu0 %v153
    %199 = vmatpush.bf16.msra.mxu0 %v151
    %200 = vmatpush.bf16.msra.mxu0 %v149
    %201 = vmatpush.bf16.msra.mxu0 %v147
    %202 = vmatpush.bf16.msra.mxu0 %v145
    %203 = vmatmul.bf16.gmra.mxu0 %v172
    %v204 = vpop.f32.mrf.mxu0
    %v205 = vadd.f32 %v102, %v204
    %v206 = vpop.f32.mrf.mxu0
    %v207 = vadd.f32 %v102, %v206
    %208 = vdwg.mxu0
    %v209 = vmax.f32 %v191, 0.0
    %v210 = vmax.f32 %v205, 0.0
    %v211 = vmax.f32 %v193, 0.0
    %v212 = vmax.f32 %v207, 0.0
    %v213 = vpack.c.bf16 %v211, %v209
    %v214 = vpack.c.bf16 %v212, %v210
    %v215 = vld [vmem:[#allocation8] sm:$0xf]
    %v216 = vld [vmem:[#allocation8 + $0x4] sm:$0xf]
    %v217 = vld [vmem:[#allocation8 + $0x8] sm:$0xf]
    %v218 = vld [vmem:[#allocation8 + $0xc] sm:$0xf]
    %v219 = vld [vmem:[#allocation8 + $0x10] sm:$0xf]
    %v220 = vld [vmem:[#allocation8 + $0x14] sm:$0xf]
    %v221 = vld [vmem:[#allocation8 + $0x18] sm:$0xf]
    %v222 = vld [vmem:[#allocation8 + $0x1c] sm:$0xf]
    %v223 = vld [vmem:[#allocation8 + $0x20] sm:$0xf]
    %v224 = vld [vmem:[#allocation8 + $0x24] sm:$0xf]
    %v225 = vld [vmem:[#allocation8 + $0x28] sm:$0xf]
    %v226 = vld [vmem:[#allocation8 + $0x2c] sm:$0xf]
    %v227 = vld [vmem:[#allocation8 + $0x30] sm:$0xf]
    %v228 = vld [vmem:[#allocation8 + $0x34] sm:$0xf]
    %v229 = vld [vmem:[#allocation8 + $0x38] sm:$0xf]
    %v230 = vld [vmem:[#allocation8 + $0x3c] sm:$0xf]
    %v231 = vld [vmem:[#allocation8 + $0x40] sm:$0xf]
    %v232 = vld [vmem:[#allocation8 + $0x44] sm:$0xf]
    %v233 = vld [vmem:[#allocation8 + $0x48] sm:$0xf]
    %v234 = vld [vmem:[#allocation8 + $0x4c] sm:$0xf]
    %v235 = vld [vmem:[#allocation8 + $0x50] sm:$0xf]
    %v236 = vld [vmem:[#allocation8 + $0x54] sm:$0xf]
    %v237 = vld [vmem:[#allocation8 + $0x58] sm:$0xf]
    %v238 = vld [vmem:[#allocation8 + $0x5c] sm:$0xf]
    %v239 = vld [vmem:[#allocation8 + $0x60] sm:$0xf]
    %v240 = vld [vmem:[#allocation8 + $0x64] sm:$0xf]
    %v241 = vld [vmem:[#allocation8 + $0x68] sm:$0xf]
    %v242 = vld [vmem:[#allocation8 + $0x6c] sm:$0xf]
    %v243 = vld [vmem:[#allocation8 + $0x70] sm:$0xf]
    %v244 = vld [vmem:[#allocation8 + $0x74] sm:$0xf]
    %v245 = vld [vmem:[#allocation8 + $0x78] sm:$0xf]
    %v246 = vld [vmem:[#allocation8 + $0x7c] sm:$0xf]
    %v247 = vld [vmem:[%s4] sm:$0x1]
    %v249 = vperm.slane %v247, 0
    %v283 = vunpack.c.l.b16 %v215
    %v284 = vunpack.c.l.b16 %v216
    %v285 = vunpack.c.l.b16 %v217
    %v286 = vunpack.c.l.b16 %v218
    %v287 = vunpack.c.l.b16 %v219
    %v288 = vunpack.c.l.b16 %v220
    %v289 = vunpack.c.l.b16 %v221
    %v290 = vunpack.c.l.b16 %v222
    %v291 = vunpack.c.l.b16 %v223
    %v292 = vunpack.c.l.b16 %v224
    %v293 = vunpack.c.l.b16 %v225
    %v294 = vunpack.c.l.b16 %v226
    %v295 = vunpack.c.l.b16 %v227
    %v296 = vunpack.c.l.b16 %v228
    %v297 = vunpack.c.l.b16 %v229
    %v298 = vunpack.c.l.b16 %v230
    %v299 = vunpack.c.l.b16 %v231
    %v300 = vunpack.c.l.b16 %v232
    %v301 = vunpack.c.l.b16 %v233
    %v302 = vunpack.c.l.b16 %v234
    %v303 = vunpack.c.l.b16 %v235
    %v304 = vunpack.c.l.b16 %v236
    %v305 = vunpack.c.l.b16 %v237
    %v306 = vunpack.c.l.b16 %v238
    %v307 = vunpack.c.l.b16 %v239
    %v308 = vunpack.c.l.b16 %v240
    %v309 = vunpack.c.l.b16 %v241
    %v310 = vunpack.c.l.b16 %v242
    %v311 = vunpack.c.l.b16 %v243
    %v312 = vunpack.c.l.b16 %v244
    %v313 = vunpack.c.l.b16 %v245
    %v314 = vunpack.c.l.b16 %v246
    %v315 = vpack.c.b16 %v284, %v283
    %v316 = vpack.c.b16 %v286, %v285
    %v317 = vpack.c.b16 %v288, %v287
    %v318 = vpack.c.b16 %v290, %v289
    %v319 = vpack.c.b16 %v292, %v291
    %v320 = vpack.c.b16 %v294, %v293
    %v321 = vpack.c.b16 %v296, %v295
    %v322 = vpack.c.b16 %v298, %v297
    %v323 = vpack.c.b16 %v300, %v299
    %v324 = vpack.c.b16 %v302, %v301
    %v325 = vpack.c.b16 %v304, %v303
    %v326 = vpack.c.b16 %v306, %v305
    %v327 = vpack.c.b16 %v308, %v307
    %v328 = vpack.c.b16 %v310, %v309
    %v329 = vpack.c.b16 %v312, %v311
    %v330 = vpack.c.b16 %v314, %v313
    %347 = vmatpush.bf16.msra.mxu0 %v322
    %348 = vmatpush.bf16.msra.mxu0 %v321
    %349 = vmatpush.bf16.msra.mxu0 %v320
    %350 = vmatpush.bf16.msra.mxu0 %v319
    %351 = vmatpush.bf16.msra.mxu0 %v318
    %352 = vmatpush.bf16.msra.mxu0 %v317
    %353 = vmatpush.bf16.msra.mxu0 %v316
    %354 = vmatpush.bf16.msra.mxu0 %v315
    %355 = vmatmul.bf16.gmra.mxu0 %v213
    %v356 = vpop.f32.mrf.mxu0
    %v357 = vadd.f32 %v249, %v356
    %v358 = vpop.f32.mrf.mxu0
    %v359 = vadd.f32 %v249, %v358
    %360 = vdwg.mxu0
    %361 = vmatpush.bf16.msra.mxu0 %v330
    %362 = vmatpush.bf16.msra.mxu0 %v329
    %363 = vmatpush.bf16.msra.mxu0 %v328
    %364 = vmatpush.bf16.msra.mxu0 %v327
    %365 = vmatpush.bf16.msra.mxu0 %v326
    %366 = vmatpush.bf16.msra.mxu0 %v325
    %367 = vmatpush.bf16.msra.mxu0 %v324
    %368 = vmatpush.bf16.msra.mxu0 %v323
    %369 = vmatmul.bf16.gmra.mxu0 %v214
    %v370 = vpop.f32.mrf.mxu0
    %v371 = vadd.f32 %v357, %v370
    %v372 = vpop.f32.mrf.mxu0
    %v373 = vadd.f32 %v359, %v372
    %374 = vdwg.mxu0
    %375 = vmax.xlane.f32.xlu0 %v371
    %v376 = vpop.xlane.xlu0 %375
    %377 = vmax.xlane.f32.xlu0 %v373
    %v378 = vpop.xlane.xlu0 %377
    %v379 = vsub.f32 %v371, %v376
    %v380 = vsub.f32 %v373, %v378
    %v381 = vmul.f32 %v379, 1.442695
    %v382 = vpow.pop %v381
    %v383 = vmul.f32 %v380, 1.442695
    %v384 = vpow.pop %v383
    %385 = vadd.xlane.f32.xlu0 %v382
    %v386 = vpop.xlane.xlu0 %385
    %387 = vadd.xlane.f32.xlu0 %v384
    %v388 = vpop.xlane.xlu0 %387
    %v389 = vrcp.pop %v386
    %v390 = vmul.f32 %v386, %v389
    %v391 = vsub.f32 1.0, %v390
    %v392 = vmul.f32 %v389, %v391
    %v393 = vadd.f32 %v389, %v392
    %vm394 = vweird.f32 %v386
    %vm395 = vweird.f32 %v389
    %vm396 = vmor %vm394, %vm395
    %v397 = vsel %vm396, %v389, %v393
    %v398 = vand.u32 2147483647, %v386
    %vm399 = vcmp.eq.f32.partialorder %v398, 8.507059e+37
    %v400 = vand.u32 %v386, 2147483648
    %v401 = vor.u32 1.1754944e-38, %v400
    %v402 = vsel %vm399, %v401, %v397
    %v403 = vmul.f32 %v382, %v402
    %v404 = vrcp.pop %v388
    %v405 = vmul.f32 %v388, %v404
    %v406 = vsub.f32 1.0, %v405
    %v407 = vmul.f32 %v404, %v406
    %v408 = vadd.f32 %v404, %v407
    %vm409 = vweird.f32 %v388
    %vm410 = vweird.f32 %v404
    %vm411 = vmor %vm409, %vm410
    %v412 = vsel %vm411, %v404, %v408
    %v413 = vand.u32 2147483647, %v388
    %vm414 = vcmp.eq.f32.partialorder %v413, 8.507059e+37
    %v415 = vand.u32 %v388, 2147483648
    %v416 = vor.u32 1.1754944e-38, %v415
    %v417 = vsel %vm414, %v416, %v412
    %v418 = vmul.f32 %v384, %v417
    %vm419 = vcmask 80896
    %420 = vst.msk [vmem:[#allocation10] sm:$0xff] %vm419, %v403
    %421 = vst.msk [vmem:[#allocation10 + $0x8] sm:$0xff] %vm419, %v418
    // Predicated region
    $region38: #{tiny_model_forward.1} parent=1 // pred_check
      _
    $region39: #{tiny_model_forward.1} parent=1 // pred_check_branch
      %423 = sbr.rel (0) target = $region41
    $region40: #{tiny_model_forward.1} parent=1 // pred_region
      %425 = vsyncadd [#allocation4], 128
      %s426 = sshll.u32 [#allocation10], 4
      %s427 = int_to_ptr.vmem [resolvable:$true] %s426
      %s428 = sshll.u32 %s5, 4
      %s429 = int_to_ptr.hbm [resolvable:$true] %s428
      %434 = dma.vmem_to_hbm [thread:$0]  %s427, 128, %s429, [#allocation4], 128, 128, 8
    $region41: #{tiny_model_forward.1} parent=1 // pred_fallthru
      _
    // Predicated region
    $region42: #{tiny_model_forward.1} parent=1 // pred_check
      _
    $region43: #{tiny_model_forward.1} parent=1 // pred_check_branch
      %436 = sbr.rel (0) target = $region45
    $region44: #{tiny_model_forward.1} parent=1 // pred_region
      %438 = dma.done [#allocation4], 256
    $region45: #{tiny_model_forward.1} parent=1 // pred_fallthru
      _
    %439 = vsyncpa [#allocation3], 1
    %440 = vsyncpa [#allocation6], 1
    %441 = vsyncpa [#allocation9], 1
    %442 = vsyncpa [#allocation4], 1

</llo_original>
